<compile_context>
chip_gen: v6e
topology: v6e:2x2x1
jax: 0.10.0
libtpu: 0.0.40
codegen_flags: <defaults>
</compile_context>

<pallas_src>
import jax
import jax.numpy as jnp
from jax.experimental import pallas as pl
from jax.experimental.pallas import tpu as pltpu

LANE = 128  # TPU lane width


def _round_up(n, m):
    return ((n + m - 1) // m) * m


def _choose_tile_m(B, max_tile=512):
    """Largest batch tile (multiple of 8) up to max_tile, keeping an even grid length
    (>= 2 when possible) so the 'parallel' batch axis splits evenly across both
    TensorCores on v7x; single-step grids are fine on single-TC v5e/v6e."""
    B8 = _round_up(max(B, 8), 8)
    n_steps = max(2, -(-B8 // max_tile))
    if n_steps % 2:
        n_steps += 1
    return _round_up(-(-B8 // n_steps), 8)


def _estimate_vmem_bytes(tile_m, F, prepared_params, out_pad, compute_dtype,
                         single_buffer_params):
    """Explicit scoped-VMEM budget from the actual footprint (+ headroom)."""
    cbytes = jnp.dtype(compute_dtype).itemsize
    nbuf_p = 1 if single_buffer_params else 2      # Pallas double-buffers inputs by default
    total = 2 * tile_m * F * cbytes                # x tile (double-buffered)
    total += 2 * tile_m * out_pad * 4              # out tile (double-buffered, f32)
    for w, b in prepared_params:
        total += nbuf_p * (w.size * w.dtype.itemsize + b.size * b.dtype.itemsize)
    widest = max(w.shape[1] for w, _ in prepared_params)
    total += 4 * tile_m * widest * 4               # f32 accumulators / intermediates headroom
    # floor at 32 MiB (safe on every chip, above v5e's 16 MiB default scoped limit),
    # cap at v7x's 64 MiB physical per-core VMEM.
    return int(min(64 << 20, max(32 << 20, 2 * total)))


def _mlp_kernel(x_ref, *refs):
    """Whole-MLP hot path for one batch tile.

    refs = (w0, b0, w1, b1, ..., w_final, b_final, out_ref).  Every hidden Linear gets
    ReLU (Dropout in eval mode is the identity); the final Linear does not.  Matmuls run
    in the params' storage dtype (bf16 by default -> native MXU mode) with f32
    accumulation; bias-add / ReLU stay in f32.
    """
    out_ref = refs[-1]
    param_refs = refs[:-1]
    n_hidden = (len(param_refs) - 2) // 2

    h = x_ref[...]  # already in the compute dtype (cast once in the wrapper)
    for i in range(n_hidden):
        w = param_refs[2 * i][...]
        b = param_refs[2 * i + 1][...]
        acc = jnp.dot(h.astype(w.dtype), w, preferred_element_type=jnp.float32)
        h = jnp.maximum(acc + b.astype(jnp.float32), 0.0)   # bias + ReLU in f32
        # TODO(synk): training-mode dropout not emitted (eval-mode Dropout == identity).

    wf = param_refs[-2][...]
    bf = param_refs[-1][...]
    out = jnp.dot(h.astype(wf.dtype), wf, preferred_element_type=jnp.float32)
    out_ref[...] = (out + bf.astype(jnp.float32)).astype(out_ref.dtype)


def prepare_mynet_params(params, param_dtype=jnp.bfloat16):
    """One-time padding + cast of MyNet params for the Pallas kernel (hoisted out of the
    forward so per-call HBM traffic is only x + the already-prepared weights).

    Output feature dims are zero-padded up to a multiple of 128 lanes.  Padding is exact:
    padded units get zero weight/bias, ReLU(0)=0, and the next layer's rows for those
    units are also zero.  The first layer's input dim stays unpadded (a block whose last
    dim equals the full array dim is legal).
    """
    prepared = []
    prev = params[0][0].shape[0]   # n_features, unpadded
    for w, b in params:
        in_dim, out_dim = w.shape
        out_pad = _round_up(out_dim, LANE)
        w_p = (jnp.zeros((prev, out_pad), param_dtype)
               .at[:in_dim, :out_dim].set(w.astype(param_dtype)))
        b_p = (jnp.zeros((1, out_pad), param_dtype)
               .at[:, :out_dim].set(b.astype(param_dtype)))
        prepared.append((w_p, b_p))
        prev = out_pad
    return prepared


def mynet_forward(x, prepared_params, *, n_out=1, tile_m=None,
                  single_buffer_params=False, vmem_limit_bytes=None):
    """MyNet forward (inference semantics) via one Pallas kernel.

    x:               [B, n_features] (any float dtype; cast to the params' compute dtype)
    prepared_params: output of prepare_mynet_params()
    single_buffer_params: put pl.Buffered(1) on the constant-index weight/bias specs
                     (useful on v7x/v5e with large hidden_dim; off by default since the
                     demo weights are tiny and default double-buffering is harmless there).
    """
    B, F = x.shape
    compute_dtype = prepared_params[0][0].dtype
    out_pad = prepared_params[-1][0].shape[1]

    if tile_m is None:
        tile_m = _choose_tile_m(B)
    B_pad = _round_up(B, tile_m)

    # Only the batch axis is padded; x is cast once to the compute dtype (half-width DMA).
    if B_pad == B:
        x_p = x.astype(compute_dtype)
    else:
        x_p = jnp.zeros((B_pad, F), compute_dtype).at[:B, :].set(x.astype(compute_dtype))

    flat_params = [p for wb in prepared_params for p in wb]

    def param_spec(shape):
        # Constant block index -> each weight/bias is DMA'd HBM->VMEM exactly once.
        if single_buffer_params:
            return pl.BlockSpec(shape, lambda i: (0, 0), pipeline_mode=pl.Buffered(1))
        return pl.BlockSpec(shape, lambda i: (0, 0))

    in_specs = [pl.BlockSpec((tile_m, F), lambda i: (i, 0))]   # last dim == full F (legal)
    for w_p, b_p in prepared_params:
        in_specs.append(param_spec(w_p.shape))
        in_specs.append(param_spec(b_p.shape))

    # Lane-dense (128-wide) output block -> unmasked vector stores; real column sliced below.
    out_specs = pl.BlockSpec((tile_m, out_pad), lambda i: (i, 0))

    if vmem_limit_bytes is None:
        vmem_limit_bytes = _estimate_vmem_bytes(tile_m, F, prepared_params, out_pad,
                                                compute_dtype, single_buffer_params)

    out_padded = pl.pallas_call(
        _mlp_kernel,
        out_shape=jax.ShapeDtypeStruct((B_pad, out_pad), jnp.float32),
        grid=(B_pad // tile_m,),
        in_specs=in_specs,
        out_specs=out_specs,
        compiler_params=pltpu.CompilerParams(
            dimension_semantics=("parallel",),
            vmem_limit_bytes=vmem_limit_bytes,
        ),
    )(x_p, *flat_params)

    return out_padded[:B, :n_out]


def init_mynet_params(key, n_features, n_layers, hidden_dim):
    """Deterministic init mirroring PyTorch nn.Linear default (U(-1/sqrt(fan_in), +))."""
    dims = [n_features] + [hidden_dim] * (n_layers - 1)  # hidden Linear layers
    params = []
    for i in range(len(dims) - 1):
        fan_in, fan_out = dims[i], dims[i + 1]
        key, kw, kb = jax.random.split(key, 3)
        bound = 1.0 / jnp.sqrt(fan_in)
        w = jax.random.uniform(kw, (fan_in, fan_out), jnp.float32, -bound, bound)
        b = jax.random.uniform(kb, (1, fan_out), jnp.float32, -bound, bound)
        params.append((w, b))
    key, kw, kb = jax.random.split(key, 3)
    bound = 1.0 / jnp.sqrt(hidden_dim)
    wf = jax.random.uniform(kw, (hidden_dim, 1), jnp.float32, -bound, bound)
    bf = jax.random.uniform(kb, (1, 1), jnp.float32, -bound, bound)
    params.append((wf, bf))
    return params


def mynet_reference(x, params, compute_dtype=jnp.float32):
    """Plain-JAX reference (unpadded). compute_dtype=bf16 mirrors the kernel's casts."""
    h = x.astype(jnp.float32)
    for w, b in params[:-1]:
        acc = jnp.dot(h.astype(compute_dtype), w.astype(compute_dtype),
                      preferred_element_type=jnp.float32)
        h = jnp.maximum(acc + b.astype(jnp.float32), 0.0)
    wf, bf = params[-1]
    return jnp.dot(h.astype(compute_dtype), wf.astype(compute_dtype),
                   preferred_element_type=jnp.float32) + bf.astype(jnp.float32)


if __name__ == "__main__":
    # Small shapes consistent with the module's forward.  batch=512 with the auto tile
    # choice gives 2 grid steps of 256 rows (even -> both v7x TensorCores busy).
    batch = 512
    n_features = 16
    n_layers = 3        # -> 2 hidden Linear+ReLU(+Dropout) blocks, then fc_final
    hidden_dim = 32

    key = jax.random.PRNGKey(0)
    key, kx, kp = jax.random.split(key, 3)
    x = jax.random.normal(kx, (batch, n_features), jnp.float32)
    params = init_mynet_params(kp, n_features, n_layers, hidden_dim)

    # One-time parameter prep (pad to 128 lanes + cast to bf16), hoisted out of forward.
    prepared = jax.block_until_ready(prepare_mynet_params(params, param_dtype=jnp.bfloat16))

    fwd = jax.jit(lambda xx, pp: mynet_forward(xx, pp))
    out = jax.block_until_ready(fwd(x, prepared))
    assert out.shape == (batch, 1), out.shape

    # Matched-precision reference (same bf16 dots, f32 accumulation) -> tight check.
    ref_matched = mynet_reference(x, params, compute_dtype=jnp.bfloat16)
    err_m = float(jnp.max(jnp.abs(out - ref_matched)))
    assert jnp.allclose(out, ref_matched, atol=2e-3, rtol=2e-3), err_m

    # Full-f32 reference -> loose check (bf16 matmul rounding).
    ref_f32 = mynet_reference(x, params, compute_dtype=jnp.float32)
    err_f = float(jnp.max(jnp.abs(out - ref_f32)))
    assert jnp.allclose(out, ref_f32, atol=5e-2, rtol=5e-2), err_f

    print("KERNEL_OK")
</pallas_src>

<mosaic_0001>
module attributes {stable_mosaic.version = 11 : i64} {
  func.func @_mlp_kernel(%arg0: i32, %arg1: memref<256x16xbf16, #tpu.memory_space<vmem>>, %arg2: memref<16x128xbf16, #tpu.memory_space<vmem>>, %arg3: memref<1x128xbf16, #tpu.memory_space<vmem>>, %arg4: memref<128x128xbf16, #tpu.memory_space<vmem>>, %arg5: memref<1x128xbf16, #tpu.memory_space<vmem>>, %arg6: memref<128x128xbf16, #tpu.memory_space<vmem>>, %arg7: memref<1x128xbf16, #tpu.memory_space<vmem>>, %arg8: memref<256x128xf32, #tpu.memory_space<vmem>>) attributes {dimension_semantics = [#tpu.dimension_semantics<parallel>], iteration_bounds = array<i64: 2>, scalar_prefetch = 0 : i64, scratch_operands = 0 : i64, tpu.core_type = #tpu.core_type<tc>, window_params = [{transform_indices = @transform_0, window_bounds = array<i64: 256, 16>}, {pipeline_mode = #tpu.pipeline_mode<synchronous>, transform_indices = @transform_1, window_bounds = array<i64: 16, 128>}, {pipeline_mode = #tpu.pipeline_mode<synchronous>, transform_indices = @transform_2, window_bounds = array<i64: 1, 128>}, {pipeline_mode = #tpu.pipeline_mode<synchronous>, transform_indices = @transform_3, window_bounds = array<i64: 128, 128>}, {pipeline_mode = #tpu.pipeline_mode<synchronous>, transform_indices = @transform_4, window_bounds = array<i64: 1, 128>}, {pipeline_mode = #tpu.pipeline_mode<synchronous>, transform_indices = @transform_5, window_bounds = array<i64: 128, 128>}, {pipeline_mode = #tpu.pipeline_mode<synchronous>, transform_indices = @transform_6, window_bounds = array<i64: 1, 128>}, {transform_indices = @transform_7, window_bounds = array<i64: 256, 128>}]} {
    %c0 = arith.constant 0 : index
    %c0_0 = arith.constant 0 : index
    %0 = vector.load %arg1[%c0, %c0_0] : memref<256x16xbf16, #tpu.memory_space<vmem>>, vector<256x16xbf16>
    %c0_1 = arith.constant 0 : index
    %c0_2 = arith.constant 0 : index
    %1 = vector.load %arg2[%c0_1, %c0_2] : memref<16x128xbf16, #tpu.memory_space<vmem>>, vector<16x128xbf16>
    %c0_3 = arith.constant 0 : index
    %c0_4 = arith.constant 0 : index
    %2 = vector.load %arg3[%c0_3, %c0_4] : memref<1x128xbf16, #tpu.memory_space<vmem>>, vector<1x128xbf16>
    %cst = arith.constant dense<0.000000e+00> : vector<256x128xf32>
    %3 = tpu.matmul %0, %1, %cst {dimension_numbers = #tpu.dot_dimension_numbers<[1], [0], [0], [1], [0, 0, 1, 1], [], []>} : vector<256x16xbf16>, vector<16x128xbf16>, vector<256x128xf32> -> vector<256x128xf32>
    %4 = arith.extf %2 : vector<1x128xbf16> to vector<1x128xf32>
    %5 = vector.broadcast %4 : vector<1x128xf32> to vector<256x128xf32>
    %6 = arith.addf %3, %5 : vector<256x128xf32>
    %cst_5 = arith.constant 0.000000e+00 : f32
    %7 = vector.broadcast %cst_5 : f32 to vector<256x128xf32>
    %8 = arith.maximumf %6, %7 : vector<256x128xf32>
    %c0_6 = arith.constant 0 : index
    %c0_7 = arith.constant 0 : index
    %9 = vector.load %arg4[%c0_6, %c0_7] : memref<128x128xbf16, #tpu.memory_space<vmem>>, vector<128x128xbf16>
    %c0_8 = arith.constant 0 : index
    %c0_9 = arith.constant 0 : index
    %10 = vector.load %arg5[%c0_8, %c0_9] : memref<1x128xbf16, #tpu.memory_space<vmem>>, vector<1x128xbf16>
    %11 = arith.truncf %8 : vector<256x128xf32> to vector<256x128xbf16>
    %cst_10 = arith.constant dense<0.000000e+00> : vector<256x128xf32>
    %12 = tpu.matmul %11, %9, %cst_10 {dimension_numbers = #tpu.dot_dimension_numbers<[1], [0], [0], [1], [0, 0, 1, 1], [], []>} : vector<256x128xbf16>, vector<128x128xbf16>, vector<256x128xf32> -> vector<256x128xf32>
    %13 = arith.extf %10 : vector<1x128xbf16> to vector<1x128xf32>
    %14 = vector.broadcast %13 : vector<1x128xf32> to vector<256x128xf32>
    %15 = arith.addf %12, %14 : vector<256x128xf32>
    %cst_11 = arith.constant 0.000000e+00 : f32
    %16 = vector.broadcast %cst_11 : f32 to vector<256x128xf32>
    %17 = arith.maximumf %15, %16 : vector<256x128xf32>
    %c0_12 = arith.constant 0 : index
    %c0_13 = arith.constant 0 : index
    %18 = vector.load %arg6[%c0_12, %c0_13] : memref<128x128xbf16, #tpu.memory_space<vmem>>, vector<128x128xbf16>
    %c0_14 = arith.constant 0 : index
    %c0_15 = arith.constant 0 : index
    %19 = vector.load %arg7[%c0_14, %c0_15] : memref<1x128xbf16, #tpu.memory_space<vmem>>, vector<1x128xbf16>
    %20 = arith.truncf %17 : vector<256x128xf32> to vector<256x128xbf16>
    %cst_16 = arith.constant dense<0.000000e+00> : vector<256x128xf32>
    %21 = tpu.matmul %20, %18, %cst_16 {dimension_numbers = #tpu.dot_dimension_numbers<[1], [0], [0], [1], [0, 0, 1, 1], [], []>} : vector<256x128xbf16>, vector<128x128xbf16>, vector<256x128xf32> -> vector<256x128xf32>
    %22 = arith.extf %19 : vector<1x128xbf16> to vector<1x128xf32>
    %23 = vector.broadcast %22 : vector<1x128xf32> to vector<256x128xf32>
    %24 = arith.addf %21, %23 : vector<256x128xf32>
    %c0_17 = arith.constant 0 : index
    %c0_18 = arith.constant 0 : index
    %25 = vector.load %arg8[%c0_17, %c0_18] : memref<256x128xf32, #tpu.memory_space<vmem>>, vector<256x128xf32>
    tpu.vector_store %arg8[%c0_17, %c0_18], %24 {strides = array<i32>} : memref<256x128xf32, #tpu.memory_space<vmem>>, vector<256x128xf32>,
    return
  }
  func.func @transform_0(%arg0: i32) -> (i32, i32) {
    %c0_i32 = arith.constant 0 : i32
    %c0_i32_0 = arith.constant 0 : i32
    return %arg0, %c0_i32 : i32, i32
  }
  func.func @transform_1(%arg0: i32) -> (i32, i32) {
    %c0_i32 = arith.constant 0 : i32
    %c0_i32_0 = arith.constant 0 : i32
    %c0_i32_1 = arith.constant 0 : i32
    return %c0_i32, %c0_i32_0 : i32, i32
  }
  func.func @transform_2(%arg0: i32) -> (i32, i32) {
    %c0_i32 = arith.constant 0 : i32
    %c0_i32_0 = arith.constant 0 : i32
    %c0_i32_1 = arith.constant 0 : i32
    return %c0_i32, %c0_i32_0 : i32, i32
  }
  func.func @transform_3(%arg0: i32) -> (i32, i32) {
    %c0_i32 = arith.constant 0 : i32
    %c0_i32_0 = arith.constant 0 : i32
    %c0_i32_1 = arith.constant 0 : i32
    return %c0_i32, %c0_i32_0 : i32, i32
  }
  func.func @transform_4(%arg0: i32) -> (i32, i32) {
    %c0_i32 = arith.constant 0 : i32
    %c0_i32_0 = arith.constant 0 : i32
    %c0_i32_1 = arith.constant 0 : i32
    return %c0_i32, %c0_i32_0 : i32, i32
  }
  func.func @transform_5(%arg0: i32) -> (i32, i32) {
    %c0_i32 = arith.constant 0 : i32
    %c0_i32_0 = arith.constant 0 : i32
    %c0_i32_1 = arith.constant 0 : i32
    return %c0_i32, %c0_i32_0 : i32, i32
  }
  func.func @transform_6(%arg0: i32) -> (i32, i32) {
    %c0_i32 = arith.constant 0 : i32
    %c0_i32_0 = arith.constant 0 : i32
    %c0_i32_1 = arith.constant 0 : i32
    return %c0_i32, %c0_i32_0 : i32, i32
  }
  func.func @transform_7(%arg0: i32) -> (i32, i32) {
    %c0_i32 = arith.constant 0 : i32
    %c0_i32_0 = arith.constant 0 : i32
    return %arg0, %c0_i32 : i32, i32
  }
}

</mosaic_0001>

<llo_original>
// kernel: _lambda_.1
$region0: #{_lambda_.1}
  #allocation0 [shape = 'u32[]', space=smem, size = 0x4, offset = 0x4, fixed_abs, tag = 'smem constant byte address 0x4 - core index']
  #allocation1 [shape = 'u32[144,128]{1,0:T(1,128)}', space=vmem, size = 0x12000, scoped, tag = 'internal scratch']
  %s0 = inlined_call_operand.vmem [shape: bf16[512,16], index: 0, kind: input, shape index: {}]
  %s1 = inlined_call_operand.vmem [shape: bf16[16,128], index: 1, kind: input, shape index: {}]
  %s2 = inlined_call_operand.vmem [shape: bf16[1,128], index: 2, kind: input, shape index: {}]
  %s3 = inlined_call_operand.vmem [shape: bf16[128,128], index: 3, kind: input, shape index: {}]
  %s4 = inlined_call_operand.vmem [shape: bf16[1,128], index: 4, kind: input, shape index: {}]
  %s5 = inlined_call_operand.vmem [shape: bf16[128,128], index: 5, kind: input, shape index: {}]
  %s6 = inlined_call_operand.vmem [shape: bf16[1,128], index: 6, kind: input, shape index: {}]
  %s7 = inlined_call_operand.vmem [shape: f32[512,128], index: 7, kind: output, shape index: {}]
  %s8 = sld [smem:[#allocation0]]
  $region61: #{_lambda_.1} parent=0
    _
  %s10 = ssub.s32 1, %s8
  %s11 = scalar_select 0, %s10, %s8
  loop: start=0, step=1, limit=4
  $region2: #{_lambda_.1} parent=0 // loop_pre_header
    _
  $region3: #{_lambda_.1} parent=0 // loop_header
    %s13 = sphi 0, %s17
    %p14 = scmp.ge.s32.totalorder %s13, 4
    %s23 = sphi 0, %s25
    %s26 = sphi 0, %s23
    %s27 = sphi 0, %s26
    %s43 = sphi 0, %s27
    %s47 = sphi 0, %s47
    %s49 = sphi 0, %s47
    %s50 = sphi 0, %s49
    %s64 = sphi 0, %s50
    %s68 = sphi 0, %s68
    %s70 = sphi 0, %s68
    %s71 = sphi 0, %s70
    %s85 = sphi 0, %s71
    %s89 = sphi 0, %s89
    %s91 = sphi 0, %s89
    %s92 = sphi 0, %s91
    %s106 = sphi 0, %s92
    %s110 = sphi 0, %s110
    %s112 = sphi 0, %s110
    %s113 = sphi 0, %s112
    %s127 = sphi 0, %s113
    %s131 = sphi 0, %s131
    %s133 = sphi 0, %s131
    %s134 = sphi 0, %s133
    %s148 = sphi 0, %s134
    %s152 = sphi 0, %s152
    %s154 = sphi 0, %s152
    %s155 = sphi 0, %s154
    %s169 = sphi 0, %s155
    %s175 = sphi 0, %s177
    %s178 = sphi 0, %s175
    %s179 = sphi 0, %s178
    %s195 = sphi 0, %s179
  $region4: #{_lambda_.1} parent=0 // loop_header_branch
    %16 = sbr.rel (%p14) target = $region8
  $region5: #{_lambda_.1} parent=0 // loop_body
    %s18 = ssub.s32 %s13, 1
    %s19 = ssub.s32 %s13, 2
    %s20 = sadd.s32 %s13, 1
    %s21 = ssub.s32 %s13, %s20
    %p22 = scmp.eq.s32.totalorder %s21, 0
    %s24 = sadd.s32 %s23, 1
    %s25 = scalar_select %p22, %s23, %s24
    %p28 = pneg %p22
    %p29 = scmp.eq.s32.totalorder %s13, 1
    %p30 = por %p28, %p29
    %p31 = scmp.ne.s32.totalorder %s23, %s26
    %p32 = scmp.eq.s32.totalorder %s13, 0
    %p33 = por %p31, %p32
    %p34 = scmp.ne.s32.totalorder %s23, %s26
    %p35 = scmp.eq.s32.totalorder %s18, 1
    %p36 = por %p34, %p35
    %p37 = scmp.ne.s32.totalorder %s26, %s27
    %p38 = scmp.eq.s32.totalorder %s18, 0
    %p39 = por %p37, %p38
    %p40 = scmp.ne.s32.totalorder %s26, %s27
    %p41 = scmp.eq.s32.totalorder %s19, 1
    %p42 = por %p40, %p41
    %p44 = scmp.ne.s32.totalorder %s27, %s43
    %p45 = scmp.eq.s32.totalorder %s19, 0
    %p46 = por %p44, %p45
    %s48 = sadd.s32 %s47, 1
    %p51 = scmp.eq.s32.totalorder %s13, 1
    %p52 = scmp.ne.s32.totalorder %s47, %s49
    %p53 = scmp.eq.s32.totalorder %s13, 0
    %p54 = por %p52, %p53
    %p55 = scmp.ne.s32.totalorder %s47, %s49
    %p56 = scmp.eq.s32.totalorder %s18, 1
    %p57 = por %p55, %p56
    %p58 = scmp.ne.s32.totalorder %s49, %s50
    %p59 = scmp.eq.s32.totalorder %s18, 0
    %p60 = por %p58, %p59
    %p61 = scmp.ne.s32.totalorder %s49, %s50
    %p62 = scmp.eq.s32.totalorder %s19, 1
    %p63 = por %p61, %p62
    %p65 = scmp.ne.s32.totalorder %s50, %s64
    %p66 = scmp.eq.s32.totalorder %s19, 0
    %p67 = por %p65, %p66
    %s69 = sadd.s32 %s68, 1
    %p72 = scmp.eq.s32.totalorder %s13, 1
    %p73 = scmp.ne.s32.totalorder %s68, %s70
    %p74 = scmp.eq.s32.totalorder %s13, 0
    %p75 = por %p73, %p74
    %p76 = scmp.ne.s32.totalorder %s68, %s70
    %p77 = scmp.eq.s32.totalorder %s18, 1
    %p78 = por %p76, %p77
    %p79 = scmp.ne.s32.totalorder %s70, %s71
    %p80 = scmp.eq.s32.totalorder %s18, 0
    %p81 = por %p79, %p80
    %p82 = scmp.ne.s32.totalorder %s70, %s71
    %p83 = scmp.eq.s32.totalorder %s19, 1
    %p84 = por %p82, %p83
    %p86 = scmp.ne.s32.totalorder %s71, %s85
    %p87 = scmp.eq.s32.totalorder %s19, 0
    %p88 = por %p86, %p87
    %s90 = sadd.s32 %s89, 1
    %p93 = scmp.eq.s32.totalorder %s13, 1
    %p94 = scmp.ne.s32.totalorder %s89, %s91
    %p95 = scmp.eq.s32.totalorder %s13, 0
    %p96 = por %p94, %p95
    %p97 = scmp.ne.s32.totalorder %s89, %s91
    %p98 = scmp.eq.s32.totalorder %s18, 1
    %p99 = por %p97, %p98
    %p100 = scmp.ne.s32.totalorder %s91, %s92
    %p101 = scmp.eq.s32.totalorder %s18, 0
    %p102 = por %p100, %p101
    %p103 = scmp.ne.s32.totalorder %s91, %s92
    %p104 = scmp.eq.s32.totalorder %s19, 1
    %p105 = por %p103, %p104
    %p107 = scmp.ne.s32.totalorder %s92, %s106
    %p108 = scmp.eq.s32.totalorder %s19, 0
    %p109 = por %p107, %p108
    %s111 = sadd.s32 %s110, 1
    %p114 = scmp.eq.s32.totalorder %s13, 1
    %p115 = scmp.ne.s32.totalorder %s110, %s112
    %p116 = scmp.eq.s32.totalorder %s13, 0
    %p117 = por %p115, %p116
    %p118 = scmp.ne.s32.totalorder %s110, %s112
    %p119 = scmp.eq.s32.totalorder %s18, 1
    %p120 = por %p118, %p119
    %p121 = scmp.ne.s32.totalorder %s112, %s113
    %p122 = scmp.eq.s32.totalorder %s18, 0
    %p123 = por %p121, %p122
    %p124 = scmp.ne.s32.totalorder %s112, %s113
    %p125 = scmp.eq.s32.totalorder %s19, 1
    %p126 = por %p124, %p125
    %p128 = scmp.ne.s32.totalorder %s113, %s127
    %p129 = scmp.eq.s32.totalorder %s19, 0
    %p130 = por %p128, %p129
    %s132 = sadd.s32 %s131, 1
    %p135 = scmp.eq.s32.totalorder %s13, 1
    %p136 = scmp.ne.s32.totalorder %s131, %s133
    %p137 = scmp.eq.s32.totalorder %s13, 0
    %p138 = por %p136, %p137
    %p139 = scmp.ne.s32.totalorder %s131, %s133
    %p140 = scmp.eq.s32.totalorder %s18, 1
    %p141 = por %p139, %p140
    %p142 = scmp.ne.s32.totalorder %s133, %s134
    %p143 = scmp.eq.s32.totalorder %s18, 0
    %p144 = por %p142, %p143
    %p145 = scmp.ne.s32.totalorder %s133, %s134
    %p146 = scmp.eq.s32.totalorder %s19, 1
    %p147 = por %p145, %p146
    %p149 = scmp.ne.s32.totalorder %s134, %s148
    %p150 = scmp.eq.s32.totalorder %s19, 0
    %p151 = por %p149, %p150
    %s153 = sadd.s32 %s152, 1
    %p156 = scmp.eq.s32.totalorder %s13, 1
    %p157 = scmp.ne.s32.totalorder %s152, %s154
    %p158 = scmp.eq.s32.totalorder %s13, 0
    %p159 = por %p157, %p158
    %p160 = scmp.ne.s32.totalorder %s152, %s154
    %p161 = scmp.eq.s32.totalorder %s18, 1
    %p162 = por %p160, %p161
    %p163 = scmp.ne.s32.totalorder %s154, %s155
    %p164 = scmp.eq.s32.totalorder %s18, 0
    %p165 = por %p163, %p164
    %p166 = scmp.ne.s32.totalorder %s154, %s155
    %p167 = scmp.eq.s32.totalorder %s19, 1
    %p168 = por %p166, %p167
    %p170 = scmp.ne.s32.totalorder %s155, %s169
    %p171 = scmp.eq.s32.totalorder %s19, 0
    %p172 = por %p170, %p171
    %s173 = ssub.s32 %s13, %s20
    %p174 = scmp.eq.s32.totalorder %s173, 0
    %s176 = sadd.s32 %s175, 1
    %s177 = scalar_select %p174, %s175, %s176
    %p180 = pneg %p174
    %p181 = scmp.eq.s32.totalorder %s13, 1
    %p182 = por %p180, %p181
    %p183 = scmp.ne.s32.totalorder %s175, %s178
    %p184 = scmp.eq.s32.totalorder %s13, 0
    %p185 = por %p183, %p184
    %p186 = scmp.ne.s32.totalorder %s175, %s178
    %p187 = scmp.eq.s32.totalorder %s18, 1
    %p188 = por %p186, %p187
    %p189 = scmp.ne.s32.totalorder %s178, %s179
    %p190 = scmp.eq.s32.totalorder %s18, 0
    %p191 = por %p189, %p190
    %p192 = scmp.ne.s32.totalorder %s178, %s179
    %p193 = scmp.eq.s32.totalorder %s19, 1
    %p194 = por %p192, %p193
    %p196 = scmp.ne.s32.totalorder %s179, %s195
    %p197 = scmp.eq.s32.totalorder %s19, 0
    %p198 = por %p196, %p197
    %p199 = scmp.le.s32.totalorder 1, %s13
    %p200 = scmp.lt.s32.totalorder %s13, 3
    %p201 = pnand %p199, %p200
    %p202 = pneg %p201
    // Predicated region
    $region9: #{_lambda_.1} parent=5 // pred_check
      _
    $region10: #{_lambda_.1} parent=5 // pred_check_branch
      %204 = sbr.rel (%p201) target = $region12
    $region11: #{_lambda_.1} parent=5 // pred_region
      %s205 = ssub.s32 %s13, 1
      // Predicated region
      $region13: #{_lambda_.1} parent=11 // pred_check
        %p206 = pneg %p60
      $region14: #{_lambda_.1} parent=11 // pred_check_branch
        %208 = sbr.rel (%p206) target = $region16
      $region15: #{_lambda_.1} parent=11 // pred_region
        _
      $region16: #{_lambda_.1} parent=11 // pred_fallthru
        _
      // Predicated region
      $region17: #{_lambda_.1} parent=11 // pred_check
        %p209 = pneg %p81
      $region18: #{_lambda_.1} parent=11 // pred_check_branch
        %211 = sbr.rel (%p209) target = $region20
      $region19: #{_lambda_.1} parent=11 // pred_region
        _
      $region20: #{_lambda_.1} parent=11 // pred_fallthru
        _
      // Predicated region
      $region21: #{_lambda_.1} parent=11 // pred_check
        %p212 = pneg %p102
      $region22: #{_lambda_.1} parent=11 // pred_check_branch
        %214 = sbr.rel (%p212) target = $region24
      $region23: #{_lambda_.1} parent=11 // pred_region
        _
      $region24: #{_lambda_.1} parent=11 // pred_fallthru
        _
      // Predicated region
      $region25: #{_lambda_.1} parent=11 // pred_check
        %p215 = pneg %p123
      $region26: #{_lambda_.1} parent=11 // pred_check_branch
        %217 = sbr.rel (%p215) target = $region28
      $region27: #{_lambda_.1} parent=11 // pred_region
        _
      $region28: #{_lambda_.1} parent=11 // pred_fallthru
        _
      // Predicated region
      $region29: #{_lambda_.1} parent=11 // pred_check
        %p218 = pneg %p144
      $region30: #{_lambda_.1} parent=11 // pred_check_branch
        %220 = sbr.rel (%p218) target = $region32
      $region31: #{_lambda_.1} parent=11 // pred_region
        _
      $region32: #{_lambda_.1} parent=11 // pred_fallthru
        _
      // Predicated region
      $region33: #{_lambda_.1} parent=11 // pred_check
        %p221 = pneg %p165
      $region34: #{_lambda_.1} parent=11 // pred_check_branch
        %223 = sbr.rel (%p221) target = $region36
      $region35: #{_lambda_.1} parent=11 // pred_region
        _
      $region36: #{_lambda_.1} parent=11 // pred_fallthru
        _
    $region12: #{_lambda_.1} parent=5 // pred_fallthru
      _
    %p224 = scmp.lt.s32.totalorder %s13, 2
    // Predicated region
    $region37: #{_lambda_.1} parent=5 // pred_check
      %p225 = pneg %p224
    $region38: #{_lambda_.1} parent=5 // pred_check_branch
      %227 = sbr.rel (%p225) target = $region40
    $region39: #{_lambda_.1} parent=5 // pred_region
      // Predicated region
      $region41: #{_lambda_.1} parent=39 // pred_check
        %p228 = pneg %p33
      $region42: #{_lambda_.1} parent=39 // pred_check_branch
        %230 = sbr.rel (%p228) target = $region44
      $region43: #{_lambda_.1} parent=39 // pred_region
        %s231 = smul.u32 32, %s13
        %p232 = scmp.lt.s32.totalorder %s231, 63
        %s233 = scalar_select %p232, %s231, 63
        %s234 = smul.addr %s233, 4
        %s235 = scalar_lea.vmem %s0, %s234
        %s236 = smul.u32 32, %s13
      $region44: #{_lambda_.1} parent=39 // pred_fallthru
        _
    $region40: #{_lambda_.1} parent=5 // pred_fallthru
      _
    %p237 = scmp.le.s32.totalorder 1, %s13
    %p238 = scmp.lt.s32.totalorder %s13, 3
    %p239 = pnand %p237, %p238
    %p240 = pneg %p239
    // Predicated region
    $region45: #{_lambda_.1} parent=5 // pred_check
      _
    $region46: #{_lambda_.1} parent=5 // pred_check_branch
      %242 = sbr.rel (%p239) target = $region48
    $region47: #{_lambda_.1} parent=5 // pred_region
      %s243 = ssub.s32 %s13, 1
      %s244 = smul.u32 32, %s18
      %p245 = scmp.lt.s32.totalorder %s244, 63
      %s246 = scalar_select %p245, %s244, 63
      %s247 = smul.addr %s246, 4
      %s248 = scalar_lea.vmem %s0, %s247
      %p249 = pneg %p39
      %p250 = pneg %p36
      %p251 = pneg %p60
      %p252 = pneg %p57
      %p253 = pneg %p81
      %p254 = pneg %p78
      %p255 = pneg %p102
      %p256 = pneg %p99
      %p257 = pneg %p123
      %p258 = pneg %p120
      %p259 = pneg %p144
      %p260 = pneg %p141
      %p261 = pneg %p165
      %p262 = pneg %p162
      %p263 = pneg %p191
      %p264 = pneg %p188
      %s265 = smul.u32 32, %s18
      %p266 = scmp.lt.s32.totalorder %s265, 63
      %s267 = scalar_select %p266, %s265, 63
      %s268 = smul.addr %s267, 8
      %s269 = scalar_lea.vmem %s7, %s268
      %s270 = smul.u32 32, %s18
      %p271 = scmp.lt.s32.totalorder %s270, 63
      %s272 = scalar_select %p271, %s270, 63
      %s273 = smul.addr %s272, 4
      %s274 = scalar_lea.vmem %s0, %s273
      %s275 = smul.u32 32, %s18
      %s276 = smul.u32 32, %s18
      %p277 = scmp.lt.s32.totalorder %s276, 63
      %s278 = scalar_select %p277, %s276, 63
      %s279 = smul.addr %s278, 8
      %s280 = scalar_lea.vmem %s7, %s279
      %s281 = smul.u32 32, %s18
      %v283 = vld [vmem:[%s274] sm:$0xf]
      %v284 = vld [vmem:[%s274 + $0x4] sm:$0xf]
      %v285 = vld [vmem:[%s274 + $0x8] sm:$0xf]
      %v286 = vld [vmem:[%s274 + $0xc] sm:$0xf]
      %v287 = vld [vmem:[%s274 + $0x10] sm:$0xf]
      %v288 = vld [vmem:[%s274 + $0x14] sm:$0xf]
      %v289 = vld [vmem:[%s274 + $0x18] sm:$0xf]
      %v290 = vld [vmem:[%s274 + $0x1c] sm:$0xf]
      %v291 = vld [vmem:[%s274 + $0x20] sm:$0xf]
      %v292 = vld [vmem:[%s274 + $0x24] sm:$0xf]
      %v293 = vld [vmem:[%s274 + $0x28] sm:$0xf]
      %v294 = vld [vmem:[%s274 + $0x2c] sm:$0xf]
      %v295 = vld [vmem:[%s274 + $0x30] sm:$0xf]
      %v296 = vld [vmem:[%s274 + $0x34] sm:$0xf]
      %v297 = vld [vmem:[%s274 + $0x38] sm:$0xf]
      %v298 = vld [vmem:[%s274 + $0x3c] sm:$0xf]
      %v299 = vld [vmem:[%s274 + $0x40] sm:$0xf]
      %v300 = vld [vmem:[%s274 + $0x44] sm:$0xf]
      %v301 = vld [vmem:[%s274 + $0x48] sm:$0xf]
      %v302 = vld [vmem:[%s274 + $0x4c] sm:$0xf]
      %v303 = vld [vmem:[%s274 + $0x50] sm:$0xf]
      %v304 = vld [vmem:[%s274 + $0x54] sm:$0xf]
      %v305 = vld [vmem:[%s274 + $0x58] sm:$0xf]
      %v306 = vld [vmem:[%s274 + $0x5c] sm:$0xf]
      %v307 = vld [vmem:[%s274 + $0x60] sm:$0xf]
      %v308 = vld [vmem:[%s274 + $0x64] sm:$0xf]
      %v309 = vld [vmem:[%s274 + $0x68] sm:$0xf]
      %v310 = vld [vmem:[%s274 + $0x6c] sm:$0xf]
      %v311 = vld [vmem:[%s274 + $0x70] sm:$0xf]
      %v312 = vld [vmem:[%s274 + $0x74] sm:$0xf]
      %v313 = vld [vmem:[%s274 + $0x78] sm:$0xf]
      %v314 = vld [vmem:[%s274 + $0x7c] sm:$0xf]
      %v315 = vld [vmem:[%s1] sm:$0xf]
      %v316 = vld [vmem:[%s1 + $0x4] sm:$0xf]
      %v317 = vld [vmem:[%s2] sm:$0x1]
      %v318 = vunpack.c.l.bf16 %v317
      %v319 = vlaneseq
      %v320 = vshrl.u32 %v319, 7
      %v321 = vsub.s32 0, %v320
      %v322 = vrot.slane %v318, %v321
      %v355 = vunpack.c.l.b16 %v283
      %v356 = vunpack.c.l.b16 %v284
      %v357 = vunpack.c.l.b16 %v285
      %v358 = vunpack.c.l.b16 %v286
      %v359 = vunpack.c.l.b16 %v287
      %v360 = vunpack.c.l.b16 %v288
      %v361 = vunpack.c.l.b16 %v289
      %v362 = vunpack.c.l.b16 %v290
      %v363 = vunpack.c.l.b16 %v291
      %v364 = vunpack.c.l.b16 %v292
      %v365 = vunpack.c.l.b16 %v293
      %v366 = vunpack.c.l.b16 %v294
      %v367 = vunpack.c.l.b16 %v295
      %v368 = vunpack.c.l.b16 %v296
      %v369 = vunpack.c.l.b16 %v297
      %v370 = vunpack.c.l.b16 %v298
      %v371 = vunpack.c.l.b16 %v299
      %v372 = vunpack.c.l.b16 %v300
      %v373 = vunpack.c.l.b16 %v301
      %v374 = vunpack.c.l.b16 %v302
      %v375 = vunpack.c.l.b16 %v303
      %v376 = vunpack.c.l.b16 %v304
      %v377 = vunpack.c.l.b16 %v305
      %v378 = vunpack.c.l.b16 %v306
      %v379 = vunpack.c.l.b16 %v307
      %v380 = vunpack.c.l.b16 %v308
      %v381 = vunpack.c.l.b16 %v309
      %v382 = vunpack.c.l.b16 %v310
      %v383 = vunpack.c.l.b16 %v311
      %v384 = vunpack.c.l.b16 %v312
      %v385 = vunpack.c.l.b16 %v313
      %v386 = vunpack.c.l.b16 %v314
      %v387 = vpack.c.b16 %v356, %v355
      %v388 = vpack.c.b16 %v358, %v357
      %v389 = vpack.c.b16 %v360, %v359
      %v390 = vpack.c.b16 %v362, %v361
      %v391 = vpack.c.b16 %v364, %v363
      %v392 = vpack.c.b16 %v366, %v365
      %v393 = vpack.c.b16 %v368, %v367
      %v394 = vpack.c.b16 %v370, %v369
      %v395 = vpack.c.b16 %v372, %v371
      %v396 = vpack.c.b16 %v374, %v373
      %v397 = vpack.c.b16 %v376, %v375
      %v398 = vpack.c.b16 %v378, %v377
      %v399 = vpack.c.b16 %v380, %v379
      %v400 = vpack.c.b16 %v382, %v381
      %v401 = vpack.c.b16 %v384, %v383
      %v402 = vpack.c.b16 %v386, %v385
      %v405 = vunpack.c.l.b16 %v315
      %v406 = vunpack.c.l.b16 %v316
      %v407 = vpack.c.b16 %v406, %v405
      %vm409 = vcmask 130048
      %v411 = vsel %vm409, %v387, 0
      %v414 = vsel %vm409, %v388, 0
      %v417 = vsel %vm409, %v389, 0
      %v420 = vsel %vm409, %v390, 0
      %v423 = vsel %vm409, %v391, 0
      %v426 = vsel %vm409, %v392, 0
      %v429 = vsel %vm409, %v393, 0
      %v432 = vsel %vm409, %v394, 0
      %v435 = vsel %vm409, %v395, 0
      %v438 = vsel %vm409, %v396, 0
      %v441 = vsel %vm409, %v397, 0
      %v444 = vsel %vm409, %v398, 0
      %v447 = vsel %vm409, %v399, 0
      %v450 = vsel %vm409, %v400, 0
      %v453 = vsel %vm409, %v401, 0
      %v456 = vsel %vm409, %v402, 0
      %458 = vmatprep.subr.bf16.mxu0 0
      %459 = vmatpush1.bf16.msra.mxu0 0
      %460 = vmatprep.subr.bf16.mxu0 0
      %461 = vmatpush1.bf16.msra.mxu0 0
      %462 = vmatprep.subr.bf16.mxu0 0
      %463 = vmatpush1.bf16.msra.mxu0 0
      %464 = vmatprep.subr.bf16.mxu0 0
      %465 = vmatpush1.bf16.msra.mxu0 0
      %466 = vmatprep.subr.bf16.mxu0 0
      %467 = vmatpush1.bf16.msra.mxu0 0
      %468 = vmatprep.subr.bf16.mxu0 0
      %469 = vmatpush1.bf16.msra.mxu0 0
      %470 = vmatprep.subr.bf16.mxu0 0
      %471 = vmatpush1.bf16.msra.mxu0 0
      %472 = vmatprep.subr.bf16.mxu0 0
      %473 = vmatpush1.bf16.msra.mxu0 %v407
      %474 = vmatprep.subr.bf16.mxu0 0
      %475 = vmatpush2.bf16.msra.mxu0 0
      %476 = vmatprep.subr.bf16.mxu0 0
      %477 = vmatpush2.bf16.msra.mxu0 0
      %478 = vmatprep.subr.bf16.mxu0 0
      %479 = vmatpush2.bf16.msra.mxu0 0
      %480 = vmatprep.subr.bf16.mxu0 0
      %481 = vmatpush2.bf16.msra.mxu0 0
      %482 = vmatprep.subr.bf16.mxu0 0
      %483 = vmatpush2.bf16.msra.mxu0 0
      %484 = vmatprep.subr.bf16.mxu0 0
      %485 = vmatpush2.bf16.msra.mxu0 0
      %486 = vmatprep.subr.bf16.mxu0 0
      %487 = vmatpush2.bf16.msra.mxu0 0
      %488 = vmatprep.subr.bf16.mxu0 0
      %489 = vmatpush2.bf16.msra.mxu0 0
      %490 = vmatprep.mubr.bf16.mxu0 0
      %491 = vmatmul.mubr.bf16.gmra.mxu0 %v411
      %v492 = vpop.f32.mrf.mxu0
      %v493 = vadd.f32 %v322, %v492
      %v494 = vpop.f32.mrf.mxu0
      %v495 = vpop.f32.mrf.mxu0
      %v496 = vadd.f32 %v322, %v495
      %v497 = vpop.f32.mrf.mxu0
      %498 = vmatprep.mubr.bf16.mxu0 0
      %499 = vmatmul.mubr.bf16.gmra.mxu0 %v414
      %v500 = vpop.f32.mrf.mxu0
      %v501 = vadd.f32 %v322, %v500
      %v502 = vpop.f32.mrf.mxu0
      %v503 = vpop.f32.mrf.mxu0
      %v504 = vadd.f32 %v322, %v503
      %v505 = vpop.f32.mrf.mxu0
      %506 = vmatprep.mubr.bf16.mxu0 0
      %507 = vmatmul.mubr.bf16.gmra.mxu0 %v417
      %v508 = vpop.f32.mrf.mxu0
      %v509 = vadd.f32 %v322, %v508
      %v510 = vpop.f32.mrf.mxu0
      %v511 = vpop.f32.mrf.mxu0
      %v512 = vadd.f32 %v322, %v511
      %v513 = vpop.f32.mrf.mxu0
      %514 = vmatprep.mubr.bf16.mxu0 0
      %515 = vmatmul.mubr.bf16.gmra.mxu0 %v420
      %v516 = vpop.f32.mrf.mxu0
      %v517 = vadd.f32 %v322, %v516
      %v518 = vpop.f32.mrf.mxu0
      %v519 = vpop.f32.mrf.mxu0
      %v520 = vadd.f32 %v322, %v519
      %v521 = vpop.f32.mrf.mxu0
      %522 = vmatprep.mubr.bf16.mxu0 0
      %523 = vmatmul.mubr.bf16.gmra.mxu0 %v423
      %v524 = vpop.f32.mrf.mxu0
      %v525 = vadd.f32 %v322, %v524
      %v526 = vpop.f32.mrf.mxu0
      %v527 = vpop.f32.mrf.mxu0
      %v528 = vadd.f32 %v322, %v527
      %v529 = vpop.f32.mrf.mxu0
      %530 = vmatprep.mubr.bf16.mxu0 0
      %531 = vmatmul.mubr.bf16.gmra.mxu0 %v426
      %v532 = vpop.f32.mrf.mxu0
      %v533 = vadd.f32 %v322, %v532
      %v534 = vpop.f32.mrf.mxu0
      %v535 = vpop.f32.mrf.mxu0
      %v536 = vadd.f32 %v322, %v535
      %v537 = vpop.f32.mrf.mxu0
      %538 = vmatprep.mubr.bf16.mxu0 0
      %539 = vmatmul.mubr.bf16.gmra.mxu0 %v429
      %v540 = vpop.f32.mrf.mxu0
      %v541 = vadd.f32 %v322, %v540
      %v542 = vpop.f32.mrf.mxu0
      %v543 = vpop.f32.mrf.mxu0
      %v544 = vadd.f32 %v322, %v543
      %v545 = vpop.f32.mrf.mxu0
      %546 = vmatprep.mubr.bf16.mxu0 0
      %547 = vmatmul.mubr.bf16.gmra.mxu0 %v432
      %v548 = vpop.f32.mrf.mxu0
      %v549 = vadd.f32 %v322, %v548
      %v550 = vpop.f32.mrf.mxu0
      %v551 = vpop.f32.mrf.mxu0
      %v552 = vadd.f32 %v322, %v551
      %v553 = vpop.f32.mrf.mxu0
      %554 = vmatprep.mubr.bf16.mxu0 0
      %555 = vmatmul.mubr.bf16.gmra.mxu0 %v435
      %v556 = vpop.f32.mrf.mxu0
      %v557 = vadd.f32 %v322, %v556
      %v558 = vpop.f32.mrf.mxu0
      %v559 = vpop.f32.mrf.mxu0
      %v560 = vadd.f32 %v322, %v559
      %v561 = vpop.f32.mrf.mxu0
      %562 = vmatprep.mubr.bf16.mxu0 0
      %563 = vmatmul.mubr.bf16.gmra.mxu0 %v438
      %v564 = vpop.f32.mrf.mxu0
      %v565 = vadd.f32 %v322, %v564
      %v566 = vpop.f32.mrf.mxu0
      %v567 = vpop.f32.mrf.mxu0
      %v568 = vadd.f32 %v322, %v567
      %v569 = vpop.f32.mrf.mxu0
      %570 = vmatprep.mubr.bf16.mxu0 0
      %571 = vmatmul.mubr.bf16.gmra.mxu0 %v441
      %v572 = vpop.f32.mrf.mxu0
      %v573 = vadd.f32 %v322, %v572
      %v574 = vpop.f32.mrf.mxu0
      %v575 = vpop.f32.mrf.mxu0
      %v576 = vadd.f32 %v322, %v575
      %v577 = vpop.f32.mrf.mxu0
      %578 = vmatprep.mubr.bf16.mxu0 0
      %579 = vmatmul.mubr.bf16.gmra.mxu0 %v444
      %v580 = vpop.f32.mrf.mxu0
      %v581 = vadd.f32 %v322, %v580
      %v582 = vpop.f32.mrf.mxu0
      %v583 = vpop.f32.mrf.mxu0
      %v584 = vadd.f32 %v322, %v583
      %v585 = vpop.f32.mrf.mxu0
      %586 = vmatprep.mubr.bf16.mxu0 0
      %587 = vmatmul.mubr.bf16.gmra.mxu0 %v447
      %v588 = vpop.f32.mrf.mxu0
      %v589 = vadd.f32 %v322, %v588
      %v590 = vpop.f32.mrf.mxu0
      %v591 = vpop.f32.mrf.mxu0
      %v592 = vadd.f32 %v322, %v591
      %v593 = vpop.f32.mrf.mxu0
      %594 = vmatprep.mubr.bf16.mxu0 0
      %595 = vmatmul.mubr.bf16.gmra.mxu0 %v450
      %v596 = vpop.f32.mrf.mxu0
      %v597 = vadd.f32 %v322, %v596
      %v598 = vpop.f32.mrf.mxu0
      %v599 = vpop.f32.mrf.mxu0
      %v600 = vadd.f32 %v322, %v599
      %v601 = vpop.f32.mrf.mxu0
      %602 = vmatprep.mubr.bf16.mxu0 0
      %603 = vmatmul.mubr.bf16.gmra.mxu0 %v453
      %v604 = vpop.f32.mrf.mxu0
      %v605 = vadd.f32 %v322, %v604
      %v606 = vpop.f32.mrf.mxu0
      %v607 = vpop.f32.mrf.mxu0
      %v608 = vadd.f32 %v322, %v607
      %v609 = vpop.f32.mrf.mxu0
      %610 = vmatprep.mubr.bf16.mxu0 0
      %611 = vmatmul.mubr.bf16.gmra.mxu0 %v456
      %v612 = vpop.f32.mrf.mxu0
      %v613 = vadd.f32 %v322, %v612
      %v614 = vpop.f32.mrf.mxu0
      %v615 = vpop.f32.mrf.mxu0
      %v616 = vadd.f32 %v322, %v615
      %v617 = vpop.f32.mrf.mxu0
      %618 = vdwg.mxu0
      %v619 = vmax.f32 %v493, 0.0
      %v620 = vmax.f32 %v496, 0.0
      %v621 = vmax.f32 %v501, 0.0
      %v622 = vmax.f32 %v504, 0.0
      %v623 = vmax.f32 %v509, 0.0
      %v624 = vmax.f32 %v512, 0.0
      %v625 = vmax.f32 %v517, 0.0
      %v626 = vmax.f32 %v520, 0.0
      %v627 = vmax.f32 %v525, 0.0
      %v628 = vmax.f32 %v528, 0.0
      %v629 = vmax.f32 %v533, 0.0
      %v630 = vmax.f32 %v536, 0.0
      %v631 = vmax.f32 %v541, 0.0
      %v632 = vmax.f32 %v544, 0.0
      %v633 = vmax.f32 %v549, 0.0
      %v634 = vmax.f32 %v552, 0.0
      %v635 = vmax.f32 %v557, 0.0
      %v636 = vmax.f32 %v560, 0.0
      %v637 = vmax.f32 %v565, 0.0
      %v638 = vmax.f32 %v568, 0.0
      %v639 = vmax.f32 %v573, 0.0
      %v640 = vmax.f32 %v576, 0.0
      %v641 = vmax.f32 %v581, 0.0
      %v642 = vmax.f32 %v584, 0.0
      %v643 = vmax.f32 %v589, 0.0
      %v644 = vmax.f32 %v592, 0.0
      %v645 = vmax.f32 %v597, 0.0
      %v646 = vmax.f32 %v600, 0.0
      %v647 = vmax.f32 %v605, 0.0
      %v648 = vmax.f32 %v608, 0.0
      %v649 = vmax.f32 %v613, 0.0
      %v650 = vmax.f32 %v616, 0.0
      %v651 = vld [vmem:[%s3] sm:$0xf]
      %v652 = vld [vmem:[%s3 + $0x4] sm:$0xf]
      %v653 = vld [vmem:[%s3 + $0x8] sm:$0xf]
      %v654 = vld [vmem:[%s3 + $0xc] sm:$0xf]
      %v655 = vld [vmem:[%s3 + $0x10] sm:$0xf]
      %v656 = vld [vmem:[%s3 + $0x14] sm:$0xf]
      %v657 = vld [vmem:[%s3 + $0x18] sm:$0xf]
      %v658 = vld [vmem:[%s3 + $0x1c] sm:$0xf]
      %v659 = vld [vmem:[%s3 + $0x20] sm:$0xf]
      %v660 = vld [vmem:[%s3 + $0x24] sm:$0xf]
      %v661 = vld [vmem:[%s3 + $0x28] sm:$0xf]
      %v662 = vld [vmem:[%s3 + $0x2c] sm:$0xf]
      %v663 = vld [vmem:[%s3 + $0x30] sm:$0xf]
      %v664 = vld [vmem:[%s3 + $0x34] sm:$0xf]
      %v665 = vld [vmem:[%s3 + $0x38] sm:$0xf]
      %v666 = vld [vmem:[%s3 + $0x3c] sm:$0xf]
      %v667 = vld [vmem:[%s4] sm:$0x1]
      %v668 = vpack.c.bf16 %v620, %v619
      %v669 = vpack.c.bf16 %v622, %v621
      %v670 = vpack.c.bf16 %v624, %v623
      %v671 = vpack.c.bf16 %v626, %v625
      %v672 = vpack.c.bf16 %v628, %v627
      %v673 = vpack.c.bf16 %v630, %v629
      %v674 = vpack.c.bf16 %v632, %v631
      %v675 = vpack.c.bf16 %v634, %v633
      %v676 = vpack.c.bf16 %v636, %v635
      %v677 = vpack.c.bf16 %v638, %v637
      %v678 = vpack.c.bf16 %v640, %v639
      %v679 = vpack.c.bf16 %v642, %v641
      %v680 = vpack.c.bf16 %v644, %v643
      %v681 = vpack.c.bf16 %v646, %v645
      %v682 = vpack.c.bf16 %v648, %v647
      %v683 = vpack.c.bf16 %v650, %v649
      %v684 = vunpack.c.l.bf16 %v667
      %v685 = vlaneseq
      %v686 = vshrl.u32 %v685, 7
      %v687 = vsub.s32 0, %v686
      %v688 = vrot.slane %v684, %v687
      %v705 = vunpack.c.l.b16 %v651
      %v706 = vunpack.c.l.b16 %v652
      %v707 = vunpack.c.l.b16 %v653
      %v708 = vunpack.c.l.b16 %v654
      %v709 = vunpack.c.l.b16 %v655
      %v710 = vunpack.c.l.b16 %v656
      %v711 = vunpack.c.l.b16 %v657
      %v712 = vunpack.c.l.b16 %v658
      %v713 = vunpack.c.l.b16 %v659
      %v714 = vunpack.c.l.b16 %v660
      %v715 = vunpack.c.l.b16 %v661
      %v716 = vunpack.c.l.b16 %v662
      %v717 = vunpack.c.l.b16 %v663
      %v718 = vunpack.c.l.b16 %v664
      %v719 = vunpack.c.l.b16 %v665
      %v720 = vunpack.c.l.b16 %v666
      %v721 = vpack.c.b16 %v706, %v705
      %v722 = vpack.c.b16 %v708, %v707
      %v723 = vpack.c.b16 %v710, %v709
      %v724 = vpack.c.b16 %v712, %v711
      %v725 = vpack.c.b16 %v714, %v713
      %v726 = vpack.c.b16 %v716, %v715
      %v727 = vpack.c.b16 %v718, %v717
      %v728 = vpack.c.b16 %v720, %v719
      %737 = vmatprep.subr.bf16.mxu0 0
      %738 = vmatpush1.bf16.msra.mxu0 %v728
      %739 = vmatprep.subr.bf16.mxu0 0
      %740 = vmatpush1.bf16.msra.mxu0 %v727
      %741 = vmatprep.subr.bf16.mxu0 0
      %742 = vmatpush1.bf16.msra.mxu0 %v726
      %743 = vmatprep.subr.bf16.mxu0 0
      %744 = vmatpush1.bf16.msra.mxu0 %v725
      %745 = vmatprep.subr.bf16.mxu0 0
      %746 = vmatpush1.bf16.msra.mxu0 %v724
      %747 = vmatprep.subr.bf16.mxu0 0
      %748 = vmatpush1.bf16.msra.mxu0 %v723
      %749 = vmatprep.subr.bf16.mxu0 0
      %750 = vmatpush1.bf16.msra.mxu0 %v722
      %751 = vmatprep.subr.bf16.mxu0 0
      %752 = vmatpush1.bf16.msra.mxu0 %v721
      %753 = vmatprep.subr.bf16.mxu0 0
      %754 = vmatpush2.bf16.msra.mxu0 0
      %755 = vmatprep.subr.bf16.mxu0 0
      %756 = vmatpush2.bf16.msra.mxu0 0
      %757 = vmatprep.subr.bf16.mxu0 0
      %758 = vmatpush2.bf16.msra.mxu0 0
      %759 = vmatprep.subr.bf16.mxu0 0
      %760 = vmatpush2.bf16.msra.mxu0 0
      %761 = vmatprep.subr.bf16.mxu0 0
      %762 = vmatpush2.bf16.msra.mxu0 0
      %763 = vmatprep.subr.bf16.mxu0 0
      %764 = vmatpush2.bf16.msra.mxu0 0
      %765 = vmatprep.subr.bf16.mxu0 0
      %766 = vmatpush2.bf16.msra.mxu0 0
      %767 = vmatprep.subr.bf16.mxu0 0
      %768 = vmatpush2.bf16.msra.mxu0 0
      %769 = vmatprep.mubr.bf16.mxu0 0
      %770 = vmatmul.mubr.bf16.gmra.mxu0 %v668
      %v771 = vpop.f32.mrf.mxu0
      %v772 = vadd.f32 %v688, %v771
      %v773 = vpop.f32.mrf.mxu0
      %v774 = vpop.f32.mrf.mxu0
      %v775 = vadd.f32 %v688, %v774
      %v776 = vpop.f32.mrf.mxu0
      %777 = vmatprep.mubr.bf16.mxu0 0
      %778 = vmatmul.mubr.bf16.gmra.mxu0 %v669
      %v779 = vpop.f32.mrf.mxu0
      %v780 = vadd.f32 %v688, %v779
      %v781 = vpop.f32.mrf.mxu0
      %v782 = vpop.f32.mrf.mxu0
      %v783 = vadd.f32 %v688, %v782
      %v784 = vpop.f32.mrf.mxu0
      %785 = vmatprep.mubr.bf16.mxu0 0
      %786 = vmatmul.mubr.bf16.gmra.mxu0 %v670
      %v787 = vpop.f32.mrf.mxu0
      %v788 = vadd.f32 %v688, %v787
      %v789 = vpop.f32.mrf.mxu0
      %v790 = vpop.f32.mrf.mxu0
      %v791 = vadd.f32 %v688, %v790
      %v792 = vpop.f32.mrf.mxu0
      %793 = vmatprep.mubr.bf16.mxu0 0
      %794 = vmatmul.mubr.bf16.gmra.mxu0 %v671
      %v795 = vpop.f32.mrf.mxu0
      %v796 = vadd.f32 %v688, %v795
      %v797 = vpop.f32.mrf.mxu0
      %v798 = vpop.f32.mrf.mxu0
      %v799 = vadd.f32 %v688, %v798
      %v800 = vpop.f32.mrf.mxu0
      %801 = vmatprep.mubr.bf16.mxu0 0
      %802 = vmatmul.mubr.bf16.gmra.mxu0 %v672
      %v803 = vpop.f32.mrf.mxu0
      %v804 = vadd.f32 %v688, %v803
      %v805 = vpop.f32.mrf.mxu0
      %v806 = vpop.f32.mrf.mxu0
      %v807 = vadd.f32 %v688, %v806
      %v808 = vpop.f32.mrf.mxu0
      %809 = vmatprep.mubr.bf16.mxu0 0
      %810 = vmatmul.mubr.bf16.gmra.mxu0 %v673
      %v811 = vpop.f32.mrf.mxu0
      %v812 = vadd.f32 %v688, %v811
      %v813 = vpop.f32.mrf.mxu0
      %v814 = vpop.f32.mrf.mxu0
      %v815 = vadd.f32 %v688, %v814
      %v816 = vpop.f32.mrf.mxu0
      %817 = vmatprep.mubr.bf16.mxu0 0
      %818 = vmatmul.mubr.bf16.gmra.mxu0 %v674
      %v819 = vpop.f32.mrf.mxu0
      %v820 = vadd.f32 %v688, %v819
      %v821 = vpop.f32.mrf.mxu0
      %v822 = vpop.f32.mrf.mxu0
      %v823 = vadd.f32 %v688, %v822
      %v824 = vpop.f32.mrf.mxu0
      %825 = vmatprep.mubr.bf16.mxu0 0
      %826 = vmatmul.mubr.bf16.gmra.mxu0 %v675
      %v827 = vpop.f32.mrf.mxu0
      %v828 = vadd.f32 %v688, %v827
      %v829 = vpop.f32.mrf.mxu0
      %v830 = vpop.f32.mrf.mxu0
      %v831 = vadd.f32 %v688, %v830
      %v832 = vpop.f32.mrf.mxu0
      %833 = vmatprep.mubr.bf16.mxu0 0
      %834 = vmatmul.mubr.bf16.gmra.mxu0 %v676
      %v835 = vpop.f32.mrf.mxu0
      %v836 = vadd.f32 %v688, %v835
      %v837 = vpop.f32.mrf.mxu0
      %v838 = vpop.f32.mrf.mxu0
      %v839 = vadd.f32 %v688, %v838
      %v840 = vpop.f32.mrf.mxu0
      %841 = vmatprep.mubr.bf16.mxu0 0
      %842 = vmatmul.mubr.bf16.gmra.mxu0 %v677
      %v843 = vpop.f32.mrf.mxu0
      %v844 = vadd.f32 %v688, %v843
      %v845 = vpop.f32.mrf.mxu0
      %v846 = vpop.f32.mrf.mxu0
      %v847 = vadd.f32 %v688, %v846
      %v848 = vpop.f32.mrf.mxu0
      %849 = vmatprep.mubr.bf16.mxu0 0
      %850 = vmatmul.mubr.bf16.gmra.mxu0 %v678
      %v851 = vpop.f32.mrf.mxu0
      %v852 = vadd.f32 %v688, %v851
      %v853 = vpop.f32.mrf.mxu0
      %v854 = vpop.f32.mrf.mxu0
      %v855 = vadd.f32 %v688, %v854
      %v856 = vpop.f32.mrf.mxu0
      %857 = vmatprep.mubr.bf16.mxu0 0
      %858 = vmatmul.mubr.bf16.gmra.mxu0 %v679
      %v859 = vpop.f32.mrf.mxu0
      %v860 = vadd.f32 %v688, %v859
      %v861 = vpop.f32.mrf.mxu0
      %v862 = vpop.f32.mrf.mxu0
      %v863 = vadd.f32 %v688, %v862
      %v864 = vpop.f32.mrf.mxu0
      %865 = vmatprep.mubr.bf16.mxu0 0
      %866 = vmatmul.mubr.bf16.gmra.mxu0 %v680
      %v867 = vpop.f32.mrf.mxu0
      %v868 = vadd.f32 %v688, %v867
      %v869 = vpop.f32.mrf.mxu0
      %v870 = vpop.f32.mrf.mxu0
      %v871 = vadd.f32 %v688, %v870
      %v872 = vpop.f32.mrf.mxu0
      %873 = vmatprep.mubr.bf16.mxu0 0
      %874 = vmatmul.mubr.bf16.gmra.mxu0 %v681
      %v875 = vpop.f32.mrf.mxu0
      %v876 = vadd.f32 %v688, %v875
      %v877 = vpop.f32.mrf.mxu0
      %v878 = vpop.f32.mrf.mxu0
      %v879 = vadd.f32 %v688, %v878
      %v880 = vpop.f32.mrf.mxu0
      %881 = vmatprep.mubr.bf16.mxu0 0
      %882 = vmatmul.mubr.bf16.gmra.mxu0 %v682
      %v883 = vpop.f32.mrf.mxu0
      %v884 = vadd.f32 %v688, %v883
      %v885 = vpop.f32.mrf.mxu0
      %v886 = vpop.f32.mrf.mxu0
      %v887 = vadd.f32 %v688, %v886
      %v888 = vpop.f32.mrf.mxu0
      %889 = vmatprep.mubr.bf16.mxu0 0
      %890 = vmatmul.mubr.bf16.gmra.mxu0 %v683
      %v891 = vpop.f32.mrf.mxu0
      %v892 = vadd.f32 %v688, %v891
      %v893 = vpop.f32.mrf.mxu0
      %v894 = vpop.f32.mrf.mxu0
      %v895 = vadd.f32 %v688, %v894
      %v896 = vpop.f32.mrf.mxu0
      %897 = vdwg.mxu0
      %v898 = vmax.f32 %v772, 0.0
      %v899 = vmax.f32 %v775, 0.0
      %v900 = vmax.f32 %v780, 0.0
      %v901 = vmax.f32 %v783, 0.0
      %v902 = vmax.f32 %v788, 0.0
      %v903 = vmax.f32 %v791, 0.0
      %v904 = vmax.f32 %v796, 0.0
      %v905 = vmax.f32 %v799, 0.0
      %v906 = vmax.f32 %v804, 0.0
      %v907 = vmax.f32 %v807, 0.0
      %v908 = vmax.f32 %v812, 0.0
      %v909 = vmax.f32 %v815, 0.0
      %v910 = vmax.f32 %v820, 0.0
      %v911 = vmax.f32 %v823, 0.0
      %v912 = vmax.f32 %v828, 0.0
      %v913 = vmax.f32 %v831, 0.0
      %v914 = vmax.f32 %v836, 0.0
      %v915 = vmax.f32 %v839, 0.0
      %v916 = vmax.f32 %v844, 0.0
      %v917 = vmax.f32 %v847, 0.0
      %v918 = vmax.f32 %v852, 0.0
      %v919 = vmax.f32 %v855, 0.0
      %v920 = vmax.f32 %v860, 0.0
      %v921 = vmax.f32 %v863, 0.0
      %v922 = vmax.f32 %v868, 0.0
      %v923 = vmax.f32 %v871, 0.0
      %v924 = vmax.f32 %v876, 0.0
      %v925 = vmax.f32 %v879, 0.0
      %v926 = vmax.f32 %v884, 0.0
      %v927 = vmax.f32 %v887, 0.0
      %v928 = vmax.f32 %v892, 0.0
      %v929 = vmax.f32 %v895, 0.0
      %v930 = vld [vmem:[%s5] sm:$0xf]
      %v931 = vld [vmem:[%s5 + $0x4] sm:$0xf]
      %v932 = vld [vmem:[%s5 + $0x8] sm:$0xf]
      %v933 = vld [vmem:[%s5 + $0xc] sm:$0xf]
      %v934 = vld [vmem:[%s5 + $0x10] sm:$0xf]
      %v935 = vld [vmem:[%s5 + $0x14] sm:$0xf]
      %v936 = vld [vmem:[%s5 + $0x18] sm:$0xf]
      %v937 = vld [vmem:[%s5 + $0x1c] sm:$0xf]
      %v938 = vld [vmem:[%s5 + $0x20] sm:$0xf]
      %v939 = vld [vmem:[%s5 + $0x24] sm:$0xf]
      %v940 = vld [vmem:[%s5 + $0x28] sm:$0xf]
      %v941 = vld [vmem:[%s5 + $0x2c] sm:$0xf]
      %v942 = vld [vmem:[%s5 + $0x30] sm:$0xf]
      %v943 = vld [vmem:[%s5 + $0x34] sm:$0xf]
      %v944 = vld [vmem:[%s5 + $0x38] sm:$0xf]
      %v945 = vld [vmem:[%s5 + $0x3c] sm:$0xf]
      %v946 = vld [vmem:[%s6] sm:$0x1]
      %v947 = vpack.c.bf16 %v899, %v898
      %v948 = vpack.c.bf16 %v901, %v900
      %v949 = vpack.c.bf16 %v903, %v902
      %v950 = vpack.c.bf16 %v905, %v904
      %v951 = vpack.c.bf16 %v907, %v906
      %v952 = vpack.c.bf16 %v909, %v908
      %v953 = vpack.c.bf16 %v911, %v910
      %v954 = vpack.c.bf16 %v913, %v912
      %v955 = vpack.c.bf16 %v915, %v914
      %v956 = vpack.c.bf16 %v917, %v916
      %v957 = vpack.c.bf16 %v919, %v918
      %v958 = vpack.c.bf16 %v921, %v920
      %v959 = vpack.c.bf16 %v923, %v922
      %v960 = vpack.c.bf16 %v925, %v924
      %v961 = vpack.c.bf16 %v927, %v926
      %v962 = vpack.c.bf16 %v929, %v928
      %v963 = vunpack.c.l.bf16 %v946
      %v964 = vlaneseq
      %v965 = vshrl.u32 %v964, 7
      %v966 = vsub.s32 0, %v965
      %v967 = vrot.slane %v963, %v966
      %v984 = vunpack.c.l.b16 %v930
      %v985 = vunpack.c.l.b16 %v931
      %v986 = vunpack.c.l.b16 %v932
      %v987 = vunpack.c.l.b16 %v933
      %v988 = vunpack.c.l.b16 %v934
      %v989 = vunpack.c.l.b16 %v935
      %v990 = vunpack.c.l.b16 %v936
      %v991 = vunpack.c.l.b16 %v937
      %v992 = vunpack.c.l.b16 %v938
      %v993 = vunpack.c.l.b16 %v939
      %v994 = vunpack.c.l.b16 %v940
      %v995 = vunpack.c.l.b16 %v941
      %v996 = vunpack.c.l.b16 %v942
      %v997 = vunpack.c.l.b16 %v943
      %v998 = vunpack.c.l.b16 %v944
      %v999 = vunpack.c.l.b16 %v945
      %v1000 = vpack.c.b16 %v985, %v984
      %v1001 = vpack.c.b16 %v987, %v986
      %v1002 = vpack.c.b16 %v989, %v988
      %v1003 = vpack.c.b16 %v991, %v990
      %v1004 = vpack.c.b16 %v993, %v992
      %v1005 = vpack.c.b16 %v995, %v994
      %v1006 = vpack.c.b16 %v997, %v996
      %v1007 = vpack.c.b16 %v999, %v998
      %1016 = vmatprep.subr.bf16.mxu0 0
      %1017 = vmatpush1.bf16.msra.mxu0 %v1007
      %1018 = vmatprep.subr.bf16.mxu0 0
      %1019 = vmatpush1.bf16.msra.mxu0 %v1006
      %1020 = vmatprep.subr.bf16.mxu0 0
      %1021 = vmatpush1.bf16.msra.mxu0 %v1005
      %1022 = vmatprep.subr.bf16.mxu0 0
      %1023 = vmatpush1.bf16.msra.mxu0 %v1004
      %1024 = vmatprep.subr.bf16.mxu0 0
      %1025 = vmatpush1.bf16.msra.mxu0 %v1003
      %1026 = vmatprep.subr.bf16.mxu0 0
      %1027 = vmatpush1.bf16.msra.mxu0 %v1002
      %1028 = vmatprep.subr.bf16.mxu0 0
      %1029 = vmatpush1.bf16.msra.mxu0 %v1001
      %1030 = vmatprep.subr.bf16.mxu0 0
      %1031 = vmatpush1.bf16.msra.mxu0 %v1000
      %1032 = vmatprep.subr.bf16.mxu0 0
      %1033 = vmatpush2.bf16.msra.mxu0 0
      %1034 = vmatprep.subr.bf16.mxu0 0
      %1035 = vmatpush2.bf16.msra.mxu0 0
      %1036 = vmatprep.subr.bf16.mxu0 0
      %1037 = vmatpush2.bf16.msra.mxu0 0
      %1038 = vmatprep.subr.bf16.mxu0 0
      %1039 = vmatpush2.bf16.msra.mxu0 0
      %1040 = vmatprep.subr.bf16.mxu0 0
      %1041 = vmatpush2.bf16.msra.mxu0 0
      %1042 = vmatprep.subr.bf16.mxu0 0
      %1043 = vmatpush2.bf16.msra.mxu0 0
      %1044 = vmatprep.subr.bf16.mxu0 0
      %1045 = vmatpush2.bf16.msra.mxu0 0
      %1046 = vmatprep.subr.bf16.mxu0 0
      %1047 = vmatpush2.bf16.msra.mxu0 0
      %1048 = vmatprep.mubr.bf16.mxu0 0
      %1049 = vmatmul.mubr.bf16.gmra.mxu0 %v947
      %v1050 = vpop.f32.mrf.mxu0
      %v1051 = vadd.f32 %v967, %v1050
      %v1052 = vpop.f32.mrf.mxu0
      %v1053 = vpop.f32.mrf.mxu0
      %v1054 = vadd.f32 %v967, %v1053
      %v1055 = vpop.f32.mrf.mxu0
      %1056 = vmatprep.mubr.bf16.mxu0 0
      %1057 = vmatmul.mubr.bf16.gmra.mxu0 %v948
      %v1058 = vpop.f32.mrf.mxu0
      %v1059 = vadd.f32 %v967, %v1058
      %v1060 = vpop.f32.mrf.mxu0
      %v1061 = vpop.f32.mrf.mxu0
      %v1062 = vadd.f32 %v967, %v1061
      %v1063 = vpop.f32.mrf.mxu0
      %1064 = vmatprep.mubr.bf16.mxu0 0
      %1065 = vmatmul.mubr.bf16.gmra.mxu0 %v949
      %v1066 = vpop.f32.mrf.mxu0
      %v1067 = vadd.f32 %v967, %v1066
      %v1068 = vpop.f32.mrf.mxu0
      %v1069 = vpop.f32.mrf.mxu0
      %v1070 = vadd.f32 %v967, %v1069
      %v1071 = vpop.f32.mrf.mxu0
      %1072 = vmatprep.mubr.bf16.mxu0 0
      %1073 = vmatmul.mubr.bf16.gmra.mxu0 %v950
      %v1074 = vpop.f32.mrf.mxu0
      %v1075 = vadd.f32 %v967, %v1074
      %v1076 = vpop.f32.mrf.mxu0
      %v1077 = vpop.f32.mrf.mxu0
      %v1078 = vadd.f32 %v967, %v1077
      %v1079 = vpop.f32.mrf.mxu0
      %1080 = vmatprep.mubr.bf16.mxu0 0
      %1081 = vmatmul.mubr.bf16.gmra.mxu0 %v951
      %v1082 = vpop.f32.mrf.mxu0
      %v1083 = vadd.f32 %v967, %v1082
      %v1084 = vpop.f32.mrf.mxu0
      %v1085 = vpop.f32.mrf.mxu0
      %v1086 = vadd.f32 %v967, %v1085
      %v1087 = vpop.f32.mrf.mxu0
      %1088 = vmatprep.mubr.bf16.mxu0 0
      %1089 = vmatmul.mubr.bf16.gmra.mxu0 %v952
      %v1090 = vpop.f32.mrf.mxu0
      %v1091 = vadd.f32 %v967, %v1090
      %v1092 = vpop.f32.mrf.mxu0
      %v1093 = vpop.f32.mrf.mxu0
      %v1094 = vadd.f32 %v967, %v1093
      %v1095 = vpop.f32.mrf.mxu0
      %1096 = vmatprep.mubr.bf16.mxu0 0
      %1097 = vmatmul.mubr.bf16.gmra.mxu0 %v953
      %v1098 = vpop.f32.mrf.mxu0
      %v1099 = vadd.f32 %v967, %v1098
      %v1100 = vpop.f32.mrf.mxu0
      %v1101 = vpop.f32.mrf.mxu0
      %v1102 = vadd.f32 %v967, %v1101
      %v1103 = vpop.f32.mrf.mxu0
      %1104 = vmatprep.mubr.bf16.mxu0 0
      %1105 = vmatmul.mubr.bf16.gmra.mxu0 %v954
      %v1106 = vpop.f32.mrf.mxu0
      %v1107 = vadd.f32 %v967, %v1106
      %v1108 = vpop.f32.mrf.mxu0
      %v1109 = vpop.f32.mrf.mxu0
      %v1110 = vadd.f32 %v967, %v1109
      %v1111 = vpop.f32.mrf.mxu0
      %1112 = vmatprep.mubr.bf16.mxu0 0
      %1113 = vmatmul.mubr.bf16.gmra.mxu0 %v955
      %v1114 = vpop.f32.mrf.mxu0
      %v1115 = vadd.f32 %v967, %v1114
      %v1116 = vpop.f32.mrf.mxu0
      %v1117 = vpop.f32.mrf.mxu0
      %v1118 = vadd.f32 %v967, %v1117
      %v1119 = vpop.f32.mrf.mxu0
      %1120 = vmatprep.mubr.bf16.mxu0 0
      %1121 = vmatmul.mubr.bf16.gmra.mxu0 %v956
      %v1122 = vpop.f32.mrf.mxu0
      %v1123 = vadd.f32 %v967, %v1122
      %v1124 = vpop.f32.mrf.mxu0
      %v1125 = vpop.f32.mrf.mxu0
      %v1126 = vadd.f32 %v967, %v1125
      %v1127 = vpop.f32.mrf.mxu0
      %1128 = vmatprep.mubr.bf16.mxu0 0
      %1129 = vmatmul.mubr.bf16.gmra.mxu0 %v957
      %v1130 = vpop.f32.mrf.mxu0
      %v1131 = vadd.f32 %v967, %v1130
      %v1132 = vpop.f32.mrf.mxu0
      %v1133 = vpop.f32.mrf.mxu0
      %v1134 = vadd.f32 %v967, %v1133
      %v1135 = vpop.f32.mrf.mxu0
      %1136 = vmatprep.mubr.bf16.mxu0 0
      %1137 = vmatmul.mubr.bf16.gmra.mxu0 %v958
      %v1138 = vpop.f32.mrf.mxu0
      %v1139 = vadd.f32 %v967, %v1138
      %v1140 = vpop.f32.mrf.mxu0
      %v1141 = vpop.f32.mrf.mxu0
      %v1142 = vadd.f32 %v967, %v1141
      %v1143 = vpop.f32.mrf.mxu0
      %1144 = vmatprep.mubr.bf16.mxu0 0
      %1145 = vmatmul.mubr.bf16.gmra.mxu0 %v959
      %v1146 = vpop.f32.mrf.mxu0
      %v1147 = vadd.f32 %v967, %v1146
      %v1148 = vpop.f32.mrf.mxu0
      %v1149 = vpop.f32.mrf.mxu0
      %v1150 = vadd.f32 %v967, %v1149
      %v1151 = vpop.f32.mrf.mxu0
      %1152 = vmatprep.mubr.bf16.mxu0 0
      %1153 = vmatmul.mubr.bf16.gmra.mxu0 %v960
      %v1154 = vpop.f32.mrf.mxu0
      %v1155 = vadd.f32 %v967, %v1154
      %v1156 = vpop.f32.mrf.mxu0
      %v1157 = vpop.f32.mrf.mxu0
      %v1158 = vadd.f32 %v967, %v1157
      %v1159 = vpop.f32.mrf.mxu0
      %1160 = vmatprep.mubr.bf16.mxu0 0
      %1161 = vmatmul.mubr.bf16.gmra.mxu0 %v961
      %v1162 = vpop.f32.mrf.mxu0
      %v1163 = vadd.f32 %v967, %v1162
      %v1164 = vpop.f32.mrf.mxu0
      %v1165 = vpop.f32.mrf.mxu0
      %v1166 = vadd.f32 %v967, %v1165
      %v1167 = vpop.f32.mrf.mxu0
      %1168 = vmatprep.mubr.bf16.mxu0 0
      %1169 = vmatmul.mubr.bf16.gmra.mxu0 %v962
      %v1170 = vpop.f32.mrf.mxu0
      %v1171 = vadd.f32 %v967, %v1170
      %v1172 = vpop.f32.mrf.mxu0
      %v1173 = vpop.f32.mrf.mxu0
      %v1174 = vadd.f32 %v967, %v1173
      %v1175 = vpop.f32.mrf.mxu0
      %1176 = vdwg.mxu0
      %1177 = vst [vmem:[%s280] sm:$0xff] %v1051
      %1178 = vst [vmem:[%s280 + $0x8] sm:$0xff] %v1054
      %1179 = vst [vmem:[%s280 + $0x10] sm:$0xff] %v1059
      %1180 = vst [vmem:[%s280 + $0x18] sm:$0xff] %v1062
      %1181 = vst [vmem:[%s280 + $0x20] sm:$0xff] %v1067
      %1182 = vst [vmem:[%s280 + $0x28] sm:$0xff] %v1070
      %1183 = vst [vmem:[%s280 + $0x30] sm:$0xff] %v1075
      %1184 = vst [vmem:[%s280 + $0x38] sm:$0xff] %v1078
      %1185 = vst [vmem:[%s280 + $0x40] sm:$0xff] %v1083
      %1186 = vst [vmem:[%s280 + $0x48] sm:$0xff] %v1086
      %1187 = vst [vmem:[%s280 + $0x50] sm:$0xff] %v1091
      %1188 = vst [vmem:[%s280 + $0x58] sm:$0xff] %v1094
      %1189 = vst [vmem:[%s280 + $0x60] sm:$0xff] %v1099
      %1190 = vst [vmem:[%s280 + $0x68] sm:$0xff] %v1102
      %1191 = vst [vmem:[%s280 + $0x70] sm:$0xff] %v1107
      %1192 = vst [vmem:[%s280 + $0x78] sm:$0xff] %v1110
      %1193 = vst [vmem:[%s280 + $0x80] sm:$0xff] %v1115
      %1194 = vst [vmem:[%s280 + $0x88] sm:$0xff] %v1118
      %1195 = vst [vmem:[%s280 + $0x90] sm:$0xff] %v1123
      %1196 = vst [vmem:[%s280 + $0x98] sm:$0xff] %v1126
      %1197 = vst [vmem:[%s280 + $0xa0] sm:$0xff] %v1131
      %1198 = vst [vmem:[%s280 + $0xa8] sm:$0xff] %v1134
      %1199 = vst [vmem:[%s280 + $0xb0] sm:$0xff] %v1139
      %1200 = vst [vmem:[%s280 + $0xb8] sm:$0xff] %v1142
      %1201 = vst [vmem:[%s280 + $0xc0] sm:$0xff] %v1147
      %1202 = vst [vmem:[%s280 + $0xc8] sm:$0xff] %v1150
      %1203 = vst [vmem:[%s280 + $0xd0] sm:$0xff] %v1155
      %1204 = vst [vmem:[%s280 + $0xd8] sm:$0xff] %v1158
      %1205 = vst [vmem:[%s280 + $0xe0] sm:$0xff] %v1163
      %1206 = vst [vmem:[%s280 + $0xe8] sm:$0xff] %v1166
      %1207 = vst [vmem:[%s280 + $0xf0] sm:$0xff] %v1171
      %1208 = vst [vmem:[%s280 + $0xf8] sm:$0xff] %v1174
      %s1209 = smul.u32 32, %s18
      %p1210 = scmp.lt.s32.totalorder %s1209, 63
      %s1211 = scalar_select %p1210, %s1209, 63
      %s1212 = smul.addr %s1211, 8
      %s1213 = scalar_lea.vmem %s7, %s1212
      // Predicated region
      $region49: #{_lambda_.1} parent=47 // pred_check
        %p1214 = pneg %p188
      $region50: #{_lambda_.1} parent=47 // pred_check_branch
        %1216 = sbr.rel (%p1214) target = $region52
      $region51: #{_lambda_.1} parent=47 // pred_region
        %s1217 = smul.u32 32, %s18
      $region52: #{_lambda_.1} parent=47 // pred_fallthru
        _
    $region48: #{_lambda_.1} parent=5 // pred_fallthru
      _
    %p1218 = scmp.le.s32.totalorder 2, %s13
    // Predicated region
    $region53: #{_lambda_.1} parent=5 // pred_check
      %p1219 = pneg %p1218
    $region54: #{_lambda_.1} parent=5 // pred_check_branch
      %1221 = sbr.rel (%p1219) target = $region56
    $region55: #{_lambda_.1} parent=5 // pred_region
      %s1222 = ssub.s32 %s13, 2
      // Predicated region
      $region57: #{_lambda_.1} parent=55 // pred_check
        %p1223 = pneg %p194
      $region58: #{_lambda_.1} parent=55 // pred_check_branch
        %1225 = sbr.rel (%p1223) target = $region60
      $region59: #{_lambda_.1} parent=55 // pred_region
        %s1226 = smul.u32 32, %s19
        %p1227 = scmp.lt.s32.totalorder %s1226, 63
        %s1228 = scalar_select %p1227, %s1226, 63
        %s1229 = smul.addr %s1228, 8
        %s1230 = scalar_lea.vmem %s7, %s1229
      $region60: #{_lambda_.1} parent=55 // pred_fallthru
        _
    $region56: #{_lambda_.1} parent=5 // pred_fallthru
      _
  $region6: #{_lambda_.1} parent=0 // loop_footer
    %s17 = sadd.s32 1, %s13
  $region7: #{_lambda_.1} parent=0 // loop_footer_branch
    %12 = sbr.rel target = $region3
  $region8: #{_lambda_.1} parent=0 // loop_exit
    _

</llo_original>
